<compile_context>
chip_gen: v5e
topology: v5e:2x2
jax: 0.10.0
libtpu: 0.0.40
codegen_flags: <defaults>
</compile_context>

<pallas_src>
import jax
import jax.numpy as jnp
from jax.experimental import pallas as pl
from jax.experimental.pallas import tpu as pltpu

_LANES = 128
_SUBLANES = 8
_MIN_GRID_STEPS = 8   # >= 4-8 pipeline steps and >= 2x TensorCores on v7x


def _round_up(x, m):
    return -(-x // m) * m


# ----------------------------------------------------------------------------
# Fused kernel builder
# ----------------------------------------------------------------------------
def _build_fused_kernel(num_layers, cls_mode, tile_n, n_valid, mask_tail):
    """Kernel producing per-tile, per-term lane partials of every loss term.

    Ref order: A_0..A_{L-1}, X, S_0..S_{L-1}, [cls refs...], out
    Out block: (8, 128) f32; sublane row t holds the (1, 128) lane-partial sum
    of term t for this n-tile (unused rows are zero).
    """

    def _lane_fold(col):
        # (1, tile_n) -> (1, 128) via 128-aligned static slices (VPU adds only,
        # no cross-lane XLU reduce, no relayout).
        acc = col[:, 0:_LANES]
        for j in range(1, tile_n // _LANES):
            acc = acc + col[:, j * _LANES:(j + 1) * _LANES]
        return acc

    def kernel(*refs):
        o_ref = refs[-1]
        a_refs = refs[:num_layers]
        x_ref = refs[num_layers]
        s_refs = refs[num_layers + 1: 2 * num_layers + 1]
        extra = refs[2 * num_layers + 1:-1]

        parts = []
        prev = x_ref[...].astype(jnp.float32)            # the 'X' of the current layer
        for li in range(num_layers):
            a = a_refs[li][...].astype(jnp.float32)      # (k_{li-1}, k_li), resident
            s = s_refs[li][...].astype(jnp.float32)      # (k_li, tile_n)
            d = jnp.dot(a, s, preferred_element_type=jnp.float32) - prev
            # sublane (row) reduce -> (1, tile_n), then lane fold -> (1, 128)
            parts.append(_lane_fold(jnp.sum(d * d, axis=0, keepdims=True)))
            prev = s   # S_li doubles as the 'X' of layer li+1 -> read from HBM once

        if cls_mode == "ce":
            yp_ref, lab_ref = extra
            logits = yp_ref[...].astype(jnp.float32)             # (c, tile_n)
            mx = jnp.max(logits, axis=0, keepdims=True)          # (1, tile_n)
            shifted = logits - mx
            lse = jnp.log(jnp.sum(jnp.exp(shifted), axis=0, keepdims=True))
            cls_iota = jax.lax.broadcasted_iota(jnp.int32, logits.shape, 0)
            sel = jnp.sum(jnp.where(cls_iota == lab_ref[...], shifted, 0.0),
                          axis=0, keepdims=True)
            per_col = lse - sel                                   # (1, tile_n)
            if mask_tail:
                # zero the contribution of zero-padded columns (global col >= n)
                gcol = (pl.program_id(0) * tile_n
                        + jax.lax.broadcasted_iota(jnp.int32, (1, tile_n), 1))
                per_col = jnp.where(gcol < n_valid, per_col, 0.0)
            parts.append(_lane_fold(per_col))
        elif cls_mode == "l2":
            yp_ref, y_ref = extra
            d = yp_ref[...].astype(jnp.float32) - y_ref[...].astype(jnp.float32)
            # padded columns are zero in both Yp and Y -> contribute 0, no mask needed
            parts.append(_lane_fold(jnp.sum(d * d, axis=0, keepdims=True)))

        # Lane-dense (8, 128) block: zero it, then write term t into sublane row t.
        o_ref[...] = jnp.zeros((_SUBLANES, _LANES), jnp.float32)
        for t, p in enumerate(parts):
            o_ref[pl.ds(t, 1), :] = p

    return kernel


# ----------------------------------------------------------------------------
# Tiling / VMEM sizing helpers
# ----------------------------------------------------------------------------
def _pick_tile_n(n, per_col_bytes, budget_bytes, min_steps=_MIN_GRID_STEPS):
    """Pick the n-tile (multiple of 128).

    Constraints:
      * per_col_bytes * tile <= budget_bytes (VMEM working budget, incl. temps),
      * grid has >= min_steps steps whenever n is large enough (pipelining +
        balanced split over >= 2 TensorCores on v7x),
      * prefer an exact divisor of n (no padding); otherwise pick the tile that
        minimizes zero-column padding for the resulting step count.
    """
    n_pad128 = _round_up(n, _LANES)
    tile_by_budget = max(_LANES, (budget_bytes // max(per_col_bytes, 1)) // _LANES * _LANES)
    tile_by_steps = max(_LANES, (n // min_steps) // _LANES * _LANES)
    cap = min(tile_by_budget, tile_by_steps, n_pad128)

    for t in range(cap, _LANES - 1, -_LANES):     # exact divisor -> no padding
        if n % t == 0:
            return t

    # Ragged n: keep the step count implied by `cap` but shrink the tile so the
    # zero-padding is at most one 128-lane group per step.
    steps = -(-n // cap)
    return _round_up(-(-n // steps), _LANES)


def _pad_cols(arr, n_pad):
    n = arr.shape[1]
    if n_pad == n:
        return arr
    return jnp.pad(arr, ((0, 0), (0, n_pad - n)))


# ----------------------------------------------------------------------------
# Energy loss (single fused pallas_call + JAX glue for the means)
# ----------------------------------------------------------------------------
def energy_loss(A_list, X, S_lst, lambd=0.0, classification_type="CrossEntropy",
                pred=None, label=None, L=None, stream_dtype=None):
    num_layers = len(A_list)
    assert num_layers >= 1 and len(S_lst) >= num_layers
    n = X.shape[1]

    # Element counts for the per-term means (taken from the ORIGINAL, unpadded arrays).
    x_size = float(X.size)
    s_sizes = [float(S_lst[i].size) for i in range(num_layers)]
    pred_size = float(pred.size) if pred is not None else 0.0

    cls_mode = None
    extra_args = []
    if pred is not None:
        if classification_type == "L2":
            cls_mode = "l2"
            Y = label
            assert Y.ndim == 2 and Y.shape == pred.shape, \
                "L2 mode expects a dense (c, n) one-hot target"
            Yp = pred
            if L is not None:
                Yp = L.astype(Yp.dtype) * Yp
                Y = L.astype(Y.dtype) * Y
            extra_args = [Yp, Y]
        else:
            cls_mode = "ce"
            Yp = pred
            lab = label.astype(jnp.int32)
            if L is not None:
                # Matches the PyTorch reference exactly: zero out logit columns and
                # labels of unlabeled points, still divide by the full n (unlabeled
                # columns contribute log(c), exactly as CrossEntropyLoss on L*Y_pred).
                Yp = L.astype(Yp.dtype) * Yp
                lab = L[0, :].astype(jnp.int32) * lab
            extra_args = [Yp, lab.reshape(1, n)]

    num_terms = num_layers + (1 if cls_mode else 0)
    # TODO(synk): spill terms across additional sublane groups for nets with > 7 layers.
    assert num_terms <= _SUBLANES

    # Optional low-precision streaming (halves HBM bytes; biggest win on v5e/v6e).
    def _maybe_cast(a):
        if stream_dtype is not None and jnp.issubdtype(a.dtype, jnp.floating):
            return a.astype(stream_dtype)
        return a

    streamed = [_maybe_cast(a) for a in ([X] + list(S_lst[:num_layers]) + extra_args)]

    streamed_row_bytes = sum(a.shape[0] * a.dtype.itemsize for a in streamed)
    max_rows = max(a.shape[0] for a in streamed)
    resident_bytes = sum(int(A.size) * A.dtype.itemsize for A in A_list)

    # Generation-aware VMEM working budget (64 MiB/TC on v7x, 128 MiB on v5e/v6e).
    try:
        vmem_cap = int(pltpu.get_tpu_info().vmem_capacity_bytes)
    except Exception:
        vmem_cap = 64 << 20   # conservative default (v7x per-TC)
    working_budget = min(40 << 20, vmem_cap // 3)

    # VMEM cost per streamed column: double-buffered inputs + ~4 f32 temporaries
    # (approx, diff, casts) of the widest streamed block.
    per_col_bytes = 2 * streamed_row_bytes + 4 * max_rows * 4
    tile_budget_bytes = max(working_budget - 2 * resident_bytes - (2 << 20), 1 << 20)

    tile_n = _pick_tile_n(n, per_col_bytes, tile_budget_bytes)
    grid_n = pl.cdiv(n, tile_n)
    n_pad = grid_n * tile_n
    if n_pad != n:
        streamed = [_pad_cols(a, n_pad) for a in streamed]
    mask_tail = (cls_mode == "ce") and (n_pad != n)

    # Explicit VMEM limit: double-buffered streamed blocks + f32 temporaries +
    # resident A's + out blocks + slack; clipped to the physical capacity.
    need = (2 * streamed_row_bytes * tile_n
            + 4 * max_rows * 4 * tile_n
            + 2 * resident_bytes
            + 2 * _SUBLANES * _LANES * 4
            + (2 << 20))
    vmem_limit = int(min(max(need, 4 << 20), vmem_cap - (4 << 20)))

    # A_i blocks have a constant index_map, so Pallas keeps them resident; they are
    # tiny, so the extra pipeline buffer is negligible (pl.Buffered(1) skipped).
    a_specs = [pl.BlockSpec(tuple(A.shape), lambda i: (0, 0)) for A in A_list]
    col_specs = [pl.BlockSpec((a.shape[0], tile_n), lambda i: (0, i)) for a in streamed]

    kernel = _build_fused_kernel(num_layers, cls_mode, tile_n, n, mask_tail)

    out = pl.pallas_call(
        kernel,
        out_shape=jax.ShapeDtypeStruct((grid_n * _SUBLANES, _LANES), jnp.float32),
        grid=(grid_n,),
        in_specs=a_specs + col_specs,
        out_specs=pl.BlockSpec((_SUBLANES, _LANES), lambda i: (i, 0)),
        compiler_params=pltpu.CompilerParams(
            dimension_semantics=("parallel",),   # distinct output block per n-tile
            vmem_limit_bytes=vmem_limit,
        ),
    )(*A_list, *streamed)

    # (grid_n*8, 128) -> per-term totals: sum grid steps (axis 0) and lanes (axis 2).
    term_sums = out.reshape(grid_n, _SUBLANES, _LANES).sum(axis=(0, 2))

    # Per-term means (Fro_Norm / MSELoss semantics), combined exactly as PyTorch does.
    total = term_sums[0] / jnp.float32(x_size)
    for li in range(1, num_layers):
        total = total + term_sums[li] / jnp.float32(s_sizes[li - 1])
    if cls_mode == "ce":
        total = total + lambd * (term_sums[num_layers] / jnp.float32(n))
    elif cls_mode == "l2":
        total = total + lambd * (term_sums[num_layers] / jnp.float32(pred_size))
    return total


# ----------------------------------------------------------------------------
# Energy_Loss_Func equivalent
# ----------------------------------------------------------------------------
class LsqNonnegStub:
    """Stand-in for net.lsqnonneglst[i] -- only .A is used by the loss."""
    def __init__(self, A):
        self.A = A


class NeuralNMFStub:
    """Stand-in for the Neural NMF net -- only .depth and .lsqnonneglst[i].A are used."""
    def __init__(self, A_list):
        self.lsqnonneglst = [LsqNonnegStub(A) for A in A_list]
        self.depth = len(A_list) + 1  # NeuralNMF depth = number of layers + 1


class EnergyLossFunc:
    """JAX/Pallas port of Energy_Loss_Func.forward (single fused kernel launch)."""

    def __init__(self, lambd=0.0, classification_type="CrossEntropy", stream_dtype=None):
        self.lambd = lambd
        self.classification_type = classification_type
        self.stream_dtype = stream_dtype   # e.g. jnp.bfloat16 to halve HBM traffic

    def __call__(self, net, X, S_lst, pred=None, label=None, L=None):
        depth = net.depth
        A_list = [net.lsqnonneglst[i].A for i in range(depth - 1)]
        if pred is None:
            assert label is None and L is None
        return energy_loss(A_list, X, S_lst, self.lambd, self.classification_type,
                           pred=pred, label=label, L=L, stream_dtype=self.stream_dtype)


# ----------------------------------------------------------------------------
# Pure-JAX references (correctness checks)
# ----------------------------------------------------------------------------
def _ref_recon_total(A_list, X, S_lst):
    def recon(Xm, Sm, Am):
        d = Am @ Sm - Xm
        return jnp.mean(d * d)

    total = recon(X, S_lst[0], A_list[0])
    for i in range(1, len(A_list)):
        total = total + recon(S_lst[i - 1], S_lst[i], A_list[i])
    return total


def _ref_ce(pred, label):
    logits = pred.T                                       # (n, c)
    lse = jax.nn.logsumexp(logits, axis=1)
    sel = jnp.take_along_axis(logits, label[:, None], axis=1)[:, 0]
    return jnp.mean(lse - sel)


# ----------------------------------------------------------------------------
# Main
# ----------------------------------------------------------------------------
if __name__ == "__main__":
    base_key = jax.random.PRNGKey(0)
    m, k0, k1, c = 32, 16, 8, 4   # small Neural NMF: depth = 3 (2 layers)

    # n = 640: multi-step grid, exact 128-divisor.  n = 200: ragged -> zero-pad
    # columns + in-kernel CE tail mask.
    for n in (640, 200):
        keys = jax.random.split(jax.random.fold_in(base_key, n), 7)
        X = jnp.abs(jax.random.normal(keys[0], (m, n), dtype=jnp.float32))
        A0 = jnp.abs(jax.random.normal(keys[1], (m, k0), dtype=jnp.float32))
        S0 = jnp.abs(jax.random.normal(keys[2], (k0, n), dtype=jnp.float32))
        A1 = jnp.abs(jax.random.normal(keys[3], (k0, k1), dtype=jnp.float32))
        S1 = jnp.abs(jax.random.normal(keys[4], (k1, n), dtype=jnp.float32))
        pred = jax.random.normal(keys[5], (c, n), dtype=jnp.float32)       # logits (c x n)
        label = jax.random.randint(keys[6], (n,), 0, c, dtype=jnp.int32)
        Y = jax.nn.one_hot(label, c, dtype=jnp.float32).T                   # (c, n) one-hot

        net = NeuralNMFStub([A0, A1])
        S_lst = [S0, S1]

        crit_ce = EnergyLossFunc(lambd=0.1, classification_type="CrossEntropy")
        crit_l2 = EnergyLossFunc(lambd=0.1, classification_type="L2")

        loss_unsup = crit_ce(net, X, S_lst)                                  # recon only
        loss_ce = crit_ce(net, X, S_lst, pred=pred, label=label)            # recon + CE
        loss_l2 = crit_l2(net, X, S_lst, pred=pred, label=Y)                # recon + L2
        loss_unsup, loss_ce, loss_l2 = jax.block_until_ready(
            (loss_unsup, loss_ce, loss_l2))

        ref_unsup = _ref_recon_total([A0, A1], X, S_lst)
        ref_ce = ref_unsup + 0.1 * _ref_ce(pred, label)
        ref_l2 = ref_unsup + 0.1 * jnp.mean((pred - Y) ** 2)

        assert jnp.allclose(loss_unsup, ref_unsup, rtol=1e-4, atol=1e-4), \
            (n, loss_unsup, ref_unsup)
        assert jnp.allclose(loss_ce, ref_ce, rtol=1e-4, atol=1e-4), \
            (n, loss_ce, ref_ce)
        assert jnp.allclose(loss_l2, ref_l2, rtol=1e-4, atol=1e-4), \
            (n, loss_l2, ref_l2)

    print("KERNEL_OK")
</pallas_src>

<mosaic_0001>
module attributes {stable_mosaic.version = 11 : i64} {
  func.func @kernel(%arg0: i32, %arg1: memref<32x16xf32, #tpu.memory_space<vmem>>, %arg2: memref<16x8xf32, #tpu.memory_space<vmem>>, %arg3: memref<32x128xf32, #tpu.memory_space<vmem>>, %arg4: memref<16x128xf32, #tpu.memory_space<vmem>>, %arg5: memref<8x128xf32, #tpu.memory_space<vmem>>, %arg6: memref<8x128xf32, #tpu.memory_space<vmem>>) attributes {dimension_semantics = [#tpu.dimension_semantics<parallel>], iteration_bounds = array<i64: 5>, scalar_prefetch = 0 : i64, scratch_operands = 0 : i64, tpu.core_type = #tpu.core_type<tc>, window_params = [{pipeline_mode = #tpu.pipeline_mode<synchronous>, transform_indices = @transform_0, window_bounds = array<i64: 32, 16>}, {pipeline_mode = #tpu.pipeline_mode<synchronous>, transform_indices = @transform_1, window_bounds = array<i64: 16, 8>}, {transform_indices = @transform_2, window_bounds = array<i64: 32, 128>}, {transform_indices = @transform_3, window_bounds = array<i64: 16, 128>}, {transform_indices = @transform_4, window_bounds = array<i64: 8, 128>}, {transform_indices = @transform_5, window_bounds = array<i64: 8, 128>}]} {
    %c0 = arith.constant 0 : index
    %c0_0 = arith.constant 0 : index
    %0 = vector.load %arg3[%c0, %c0_0] : memref<32x128xf32, #tpu.memory_space<vmem>>, vector<32x128xf32>
    %c0_1 = arith.constant 0 : index
    %c0_2 = arith.constant 0 : index
    %1 = vector.load %arg1[%c0_1, %c0_2] : memref<32x16xf32, #tpu.memory_space<vmem>>, vector<32x16xf32>
    %c0_3 = arith.constant 0 : index
    %c0_4 = arith.constant 0 : index
    %2 = vector.load %arg4[%c0_3, %c0_4] : memref<16x128xf32, #tpu.memory_space<vmem>>, vector<16x128xf32>
    %cst = arith.constant dense<0.000000e+00> : vector<32x128xf32>
    %3 = tpu.matmul %1, %2, %cst {dimension_numbers = #tpu.dot_dimension_numbers<[1], [0], [0], [1], [0, 0, 1, 1], [], []>} : vector<32x16xf32>, vector<16x128xf32>, vector<32x128xf32> -> vector<32x128xf32>
    %4 = arith.subf %3, %0 : vector<32x128xf32>
    %5 = arith.mulf %4, %4 : vector<32x128xf32>
    %cst_5 = arith.constant dense<0.000000e+00> : vector<128xf32>
    %6 = vector.multi_reduction <add>, %5, %cst_5 [0] : vector<32x128xf32> to vector<128xf32>
    %7 = vector.shape_cast %6 : vector<128xf32> to vector<1x128xf32>
    %c0_6 = arith.constant 0 : index
    %c0_7 = arith.constant 0 : index
    %8 = vector.load %arg2[%c0_6, %c0_7] : memref<16x8xf32, #tpu.memory_space<vmem>>, vector<16x8xf32>
    %c0_8 = arith.constant 0 : index
    %c0_9 = arith.constant 0 : index
    %9 = vector.load %arg5[%c0_8, %c0_9] : memref<8x128xf32, #tpu.memory_space<vmem>>, vector<8x128xf32>
    %cst_10 = arith.constant dense<0.000000e+00> : vector<16x128xf32>
    %10 = tpu.matmul %8, %9, %cst_10 {dimension_numbers = #tpu.dot_dimension_numbers<[1], [0], [0], [1], [0, 0, 1, 1], [], []>} : vector<16x8xf32>, vector<8x128xf32>, vector<16x128xf32> -> vector<16x128xf32>
    %11 = arith.subf %10, %2 : vector<16x128xf32>
    %12 = arith.mulf %11, %11 : vector<16x128xf32>
    %cst_11 = arith.constant dense<0.000000e+00> : vector<128xf32>
    %13 = vector.multi_reduction <add>, %12, %cst_11 [0] : vector<16x128xf32> to vector<128xf32>
    %14 = vector.shape_cast %13 : vector<128xf32> to vector<1x128xf32>
    %cst_12 = arith.constant 0.000000e+00 : f32
    %15 = vector.broadcast %cst_12 : f32 to vector<8x128xf32>
    %c0_13 = arith.constant 0 : index
    %c0_14 = arith.constant 0 : index
    %16 = vector.load %arg6[%c0_13, %c0_14] : memref<8x128xf32, #tpu.memory_space<vmem>>, vector<8x128xf32>
    tpu.vector_store %arg6[%c0_13, %c0_14], %15 {strides = array<i32>} : memref<8x128xf32, #tpu.memory_space<vmem>>, vector<8x128xf32>,
    %c0_15 = arith.constant 0 : index
    %c0_16 = arith.constant 0 : index
    %17 = vector.load %arg6[%c0_15, %c0_16] : memref<8x128xf32, #tpu.memory_space<vmem>>, vector<1x128xf32>
    tpu.vector_store %arg6[%c0_15, %c0_16], %7 {strides = array<i32>} : memref<8x128xf32, #tpu.memory_space<vmem>>, vector<1x128xf32>,
    %c1 = arith.constant 1 : index
    %c0_17 = arith.constant 0 : index
    %18 = vector.load %arg6[%c1, %c0_17] : memref<8x128xf32, #tpu.memory_space<vmem>>, vector<1x128xf32>
    tpu.vector_store %arg6[%c1, %c0_17], %14 {strides = array<i32>} : memref<8x128xf32, #tpu.memory_space<vmem>>, vector<1x128xf32>,
    return
  }
  func.func @transform_0(%arg0: i32) -> (i32, i32) {
    %c0_i32 = arith.constant 0 : i32
    %c0_i32_0 = arith.constant 0 : i32
    %c0_i32_1 = arith.constant 0 : i32
    return %c0_i32, %c0_i32_0 : i32, i32
  }
  func.func @transform_1(%arg0: i32) -> (i32, i32) {
    %c0_i32 = arith.constant 0 : i32
    %c0_i32_0 = arith.constant 0 : i32
    %c0_i32_1 = arith.constant 0 : i32
    return %c0_i32, %c0_i32_0 : i32, i32
  }
  func.func @transform_2(%arg0: i32) -> (i32, i32) {
    %c0_i32 = arith.constant 0 : i32
    %c0_i32_0 = arith.constant 0 : i32
    return %c0_i32, %arg0 : i32, i32
  }
  func.func @transform_3(%arg0: i32) -> (i32, i32) {
    %c0_i32 = arith.constant 0 : i32
    %c0_i32_0 = arith.constant 0 : i32
    return %c0_i32, %arg0 : i32, i32
  }
  func.func @transform_4(%arg0: i32) -> (i32, i32) {
    %c0_i32 = arith.constant 0 : i32
    %c0_i32_0 = arith.constant 0 : i32
    return %c0_i32, %arg0 : i32, i32
  }
  func.func @transform_5(%arg0: i32) -> (i32, i32) {
    %c0_i32 = arith.constant 0 : i32
    %c0_i32_0 = arith.constant 0 : i32
    return %arg0, %c0_i32 : i32, i32
  }
}

</mosaic_0001>

<llo_original>
// kernel: tpu_custom_call.1
$region0: #{tpu_custom_call.1}
  #allocation0 [shape = 'u32[]', space=smem, size = 0x4, offset = 0x4, fixed_abs, tag = 'smem constant byte address 0x4 - core index']
  #allocation1 [shape = 'u32[72,128]{1,0:T(1,128)}', space=vmem, size = 0x9000, scoped, tag = 'internal scratch']
  %s0 = inlined_call_operand.vmem [shape: f32[32,16], index: 0, kind: input, shape index: {}]
  %s1 = inlined_call_operand.vmem [shape: f32[16,8], index: 1, kind: input, shape index: {}]
  %s2 = inlined_call_operand.hbm [shape: f32[32,640], index: 2, kind: input, shape index: {}]
  %s3 = inlined_call_operand.hbm [shape: f32[16,640], index: 3, kind: input, shape index: {}]
  %s4 = inlined_call_operand.vmem [shape: f32[8,640], index: 4, kind: input, shape index: {}]
  %s5 = inlined_call_operand.hbm [shape: f32[40,128], index: 5, kind: output, shape index: {}]
  %s6 = sld [smem:[#allocation0]]
  $region61: #{tpu_custom_call.1} parent=0
    _
  %s8 = ssub.s32 1, %s6
  %s9 = scalar_select 0, %s8, %s6
  $region1: #{tpu_custom_call.1} parent=0
    #allocation2 [shape = 'u8[32768]{0}', space=vmem, size = 0x8000, scoped, tag = 'input window, operand 2']
    #allocation3 [shape = 's32[2]{0}', space=sflag, size = 0x8, scoped, tag = 'scoped memory for tpu_custom_call.1']
    #allocation4 [shape = 's32[2]{0}', space=sflag, size = 0x8, scoped, tag = 'scoped memory for tpu_custom_call.1']
    #allocation5 [shape = 'u8[16384]{0}', space=vmem, size = 0x4000, scoped, tag = 'input window, operand 3']
    #allocation6 [shape = 's32[2]{0}', space=sflag, size = 0x8, scoped, tag = 'scoped memory for tpu_custom_call.1']
    #allocation7 [shape = 'u8[8192]{0}', space=vmem, size = 0x2000, scoped, tag = 'output window, operand 0']
    %10 = vsyncpa [#allocation3], 0
    %s11 = scalar_lea.sflag [#allocation3], 1
    %12 = vsyncpa %s11, 0
    %13 = vsyncpa [#allocation6], 0
    %s14 = scalar_lea.sflag [#allocation6], 1
    %15 = vsyncpa %s14, 0
    %16 = vsyncpa [#allocation4], 0
    %s17 = scalar_lea.sflag [#allocation4], 1
    %18 = vsyncpa %s17, 0
    loop: start=0, step=1, limit=7
    $region2: #{tpu_custom_call.1} parent=1 // loop_pre_header
      _
    $region3: #{tpu_custom_call.1} parent=1 // loop_header
      %s20 = sphi 0, %s24
      %p21 = scmp.ge.s32.totalorder %s20, 7
      %s28 = sphi 0, %s28
      %s30 = sphi 0, %s28
      %s31 = sphi 0, %s30
      %s45 = sphi 0, %s31
      %s49 = sphi 0, %s49
      %s51 = sphi 0, %s49
      %s52 = sphi 0, %s51
      %s66 = sphi 0, %s52
      %s72 = sphi 0, %s74
      %s75 = sphi 0, %s72
      %s76 = sphi 0, %s75
      %s92 = sphi 0, %s76
      %s98 = sphi 0, %s100
      %s101 = sphi 0, %s98
      %s102 = sphi 0, %s101
      %s118 = sphi 0, %s102
      %s124 = sphi 0, %s126
      %s127 = sphi 0, %s124
      %s128 = sphi 0, %s127
      %s144 = sphi 0, %s128
      %s150 = sphi 0, %s152
      %s153 = sphi 0, %s150
      %s154 = sphi 0, %s153
      %s170 = sphi 0, %s154
    $region4: #{tpu_custom_call.1} parent=1 // loop_header_branch
      %23 = sbr.rel (%p21) target = $region8
    $region5: #{tpu_custom_call.1} parent=1 // loop_body
      %s25 = ssub.s32 %s20, 1
      %s26 = ssub.s32 %s20, 2
      %s27 = sadd.s32 %s20, 1
      %s29 = sadd.s32 %s28, 1
      %p32 = scmp.eq.s32.totalorder %s20, 4
      %p33 = scmp.ne.s32.totalorder %s28, %s30
      %p34 = scmp.eq.s32.totalorder %s20, 0
      %p35 = por %p33, %p34
      %p36 = scmp.ne.s32.totalorder %s28, %s30
      %p37 = scmp.eq.s32.totalorder %s25, 4
      %p38 = por %p36, %p37
      %p39 = scmp.ne.s32.totalorder %s30, %s31
      %p40 = scmp.eq.s32.totalorder %s25, 0
      %p41 = por %p39, %p40
      %p42 = scmp.ne.s32.totalorder %s30, %s31
      %p43 = scmp.eq.s32.totalorder %s26, 4
      %p44 = por %p42, %p43
      %p46 = scmp.ne.s32.totalorder %s31, %s45
      %p47 = scmp.eq.s32.totalorder %s26, 0
      %p48 = por %p46, %p47
      %s50 = sadd.s32 %s49, 1
      %p53 = scmp.eq.s32.totalorder %s20, 4
      %p54 = scmp.ne.s32.totalorder %s49, %s51
      %p55 = scmp.eq.s32.totalorder %s20, 0
      %p56 = por %p54, %p55
      %p57 = scmp.ne.s32.totalorder %s49, %s51
      %p58 = scmp.eq.s32.totalorder %s25, 4
      %p59 = por %p57, %p58
      %p60 = scmp.ne.s32.totalorder %s51, %s52
      %p61 = scmp.eq.s32.totalorder %s25, 0
      %p62 = por %p60, %p61
      %p63 = scmp.ne.s32.totalorder %s51, %s52
      %p64 = scmp.eq.s32.totalorder %s26, 4
      %p65 = por %p63, %p64
      %p67 = scmp.ne.s32.totalorder %s52, %s66
      %p68 = scmp.eq.s32.totalorder %s26, 0
      %p69 = por %p67, %p68
      %s70 = ssub.s32 %s20, %s27
      %p71 = scmp.eq.s32.totalorder %s70, 0
      %s73 = sadd.s32 %s72, 1
      %s74 = scalar_select %p71, %s72, %s73
      %p77 = pneg %p71
      %p78 = scmp.eq.s32.totalorder %s20, 4
      %p79 = por %p77, %p78
      %p80 = scmp.ne.s32.totalorder %s72, %s75
      %p81 = scmp.eq.s32.totalorder %s20, 0
      %p82 = por %p80, %p81
      %p83 = scmp.ne.s32.totalorder %s72, %s75
      %p84 = scmp.eq.s32.totalorder %s25, 4
      %p85 = por %p83, %p84
      %p86 = scmp.ne.s32.totalorder %s75, %s76
      %p87 = scmp.eq.s32.totalorder %s25, 0
      %p88 = por %p86, %p87
      %p89 = scmp.ne.s32.totalorder %s75, %s76
      %p90 = scmp.eq.s32.totalorder %s26, 4
      %p91 = por %p89, %p90
      %p93 = scmp.ne.s32.totalorder %s76, %s92
      %p94 = scmp.eq.s32.totalorder %s26, 0
      %p95 = por %p93, %p94
      %s96 = ssub.s32 %s20, %s27
      %p97 = scmp.eq.s32.totalorder %s96, 0
      %s99 = sadd.s32 %s98, 1
      %s100 = scalar_select %p97, %s98, %s99
      %p103 = pneg %p97
      %p104 = scmp.eq.s32.totalorder %s20, 4
      %p105 = por %p103, %p104
      %p106 = scmp.ne.s32.totalorder %s98, %s101
      %p107 = scmp.eq.s32.totalorder %s20, 0
      %p108 = por %p106, %p107
      %p109 = scmp.ne.s32.totalorder %s98, %s101
      %p110 = scmp.eq.s32.totalorder %s25, 4
      %p111 = por %p109, %p110
      %p112 = scmp.ne.s32.totalorder %s101, %s102
      %p113 = scmp.eq.s32.totalorder %s25, 0
      %p114 = por %p112, %p113
      %p115 = scmp.ne.s32.totalorder %s101, %s102
      %p116 = scmp.eq.s32.totalorder %s26, 4
      %p117 = por %p115, %p116
      %p119 = scmp.ne.s32.totalorder %s102, %s118
      %p120 = scmp.eq.s32.totalorder %s26, 0
      %p121 = por %p119, %p120
      %s122 = ssub.s32 %s20, %s27
      %p123 = scmp.eq.s32.totalorder %s122, 0
      %s125 = sadd.s32 %s124, 1
      %s126 = scalar_select %p123, %s124, %s125
      %p129 = pneg %p123
      %p130 = scmp.eq.s32.totalorder %s20, 4
      %p131 = por %p129, %p130
      %p132 = scmp.ne.s32.totalorder %s124, %s127
      %p133 = scmp.eq.s32.totalorder %s20, 0
      %p134 = por %p132, %p133
      %p135 = scmp.ne.s32.totalorder %s124, %s127
      %p136 = scmp.eq.s32.totalorder %s25, 4
      %p137 = por %p135, %p136
      %p138 = scmp.ne.s32.totalorder %s127, %s128
      %p139 = scmp.eq.s32.totalorder %s25, 0
      %p140 = por %p138, %p139
      %p141 = scmp.ne.s32.totalorder %s127, %s128
      %p142 = scmp.eq.s32.totalorder %s26, 4
      %p143 = por %p141, %p142
      %p145 = scmp.ne.s32.totalorder %s128, %s144
      %p146 = scmp.eq.s32.totalorder %s26, 0
      %p147 = por %p145, %p146
      %s148 = ssub.s32 %s20, %s27
      %p149 = scmp.eq.s32.totalorder %s148, 0
      %s151 = sadd.s32 %s150, 1
      %s152 = scalar_select %p149, %s150, %s151
      %p155 = pneg %p149
      %p156 = scmp.eq.s32.totalorder %s20, 4
      %p157 = por %p155, %p156
      %p158 = scmp.ne.s32.totalorder %s150, %s153
      %p159 = scmp.eq.s32.totalorder %s20, 0
      %p160 = por %p158, %p159
      %p161 = scmp.ne.s32.totalorder %s150, %s153
      %p162 = scmp.eq.s32.totalorder %s25, 4
      %p163 = por %p161, %p162
      %p164 = scmp.ne.s32.totalorder %s153, %s154
      %p165 = scmp.eq.s32.totalorder %s25, 0
      %p166 = por %p164, %p165
      %p167 = scmp.ne.s32.totalorder %s153, %s154
      %p168 = scmp.eq.s32.totalorder %s26, 4
      %p169 = por %p167, %p168
      %p171 = scmp.ne.s32.totalorder %s154, %s170
      %p172 = scmp.eq.s32.totalorder %s26, 0
      %p173 = por %p171, %p172
      %p174 = scmp.le.s32.totalorder 1, %s20
      %p175 = scmp.lt.s32.totalorder %s20, 6
      %p176 = pnand %p174, %p175
      %p177 = pneg %p176
      // Predicated region
      $region9: #{tpu_custom_call.1} parent=5 // pred_check
        _
      $region10: #{tpu_custom_call.1} parent=5 // pred_check_branch
        %179 = sbr.rel (%p176) target = $region12
      $region11: #{tpu_custom_call.1} parent=5 // pred_region
        %s180 = ssub.s32 %s20, 1
        // Predicated region
        $region13: #{tpu_custom_call.1} parent=11 // pred_check
          %p181 = pneg %p41
        $region14: #{tpu_custom_call.1} parent=11 // pred_check_branch
          %183 = sbr.rel (%p181) target = $region16
        $region15: #{tpu_custom_call.1} parent=11 // pred_region
          _
        $region16: #{tpu_custom_call.1} parent=11 // pred_fallthru
          _
        // Predicated region
        $region17: #{tpu_custom_call.1} parent=11 // pred_check
          %p184 = pneg %p62
        $region18: #{tpu_custom_call.1} parent=11 // pred_check_branch
          %186 = sbr.rel (%p184) target = $region20
        $region19: #{tpu_custom_call.1} parent=11 // pred_region
          _
        $region20: #{tpu_custom_call.1} parent=11 // pred_fallthru
          _
      $region12: #{tpu_custom_call.1} parent=5 // pred_fallthru
        _
      %p187 = scmp.lt.s32.totalorder %s20, 5
      // Predicated region
      $region21: #{tpu_custom_call.1} parent=5 // pred_check
        %p188 = pneg %p187
      $region22: #{tpu_custom_call.1} parent=5 // pred_check_branch
        %190 = sbr.rel (%p188) target = $region24
      $region23: #{tpu_custom_call.1} parent=5 // pred_region
        // Predicated region
        $region25: #{tpu_custom_call.1} parent=23 // pred_check
          %p191 = pneg %p82
        $region26: #{tpu_custom_call.1} parent=23 // pred_check_branch
          %193 = sbr.rel (%p191) target = $region28
        $region27: #{tpu_custom_call.1} parent=23 // pred_region
          %s194 = sand.u32 %s72, 1
          %s195 = scalar_lea.sflag [#allocation3], %s194
          %s196 = sand.u32 %s72, 1
          %s197 = smul.addr %s196, 32
          %s198 = scalar_lea.vmem [#allocation2], %s197
          %200 = vsyncadd %s195, 0
          %s201 = smul.addr %s20, 8
          %s202 = scalar_lea.hbm %s2, %s201
          %s203 = sshll.u32 %s202, 4
          %s204 = int_to_ptr.hbm [resolvable:$true] %s203
          %s205 = sshll.u32 %s198, 4
          %s206 = int_to_ptr.vmem [resolvable:$true] %s205
          %211 = dma.hbm_to_vmem [thread:$0]  %s204, 512, %s206, %s195, 640, 128, 8
        $region28: #{tpu_custom_call.1} parent=23 // pred_fallthru
          _
        // Predicated region
        $region29: #{tpu_custom_call.1} parent=23 // pred_check
          %p212 = pneg %p108
        $region30: #{tpu_custom_call.1} parent=23 // pred_check_branch
          %214 = sbr.rel (%p212) target = $region32
        $region31: #{tpu_custom_call.1} parent=23 // pred_region
          %s215 = sand.u32 %s98, 1
          %s216 = scalar_lea.sflag [#allocation6], %s215
          %s217 = sand.u32 %s98, 1
          %s218 = smul.addr %s217, 16
          %s219 = scalar_lea.vmem [#allocation5], %s218
          %221 = vsyncadd %s216, 0
          %s222 = smul.addr %s20, 8
          %s223 = scalar_lea.hbm %s3, %s222
          %s224 = sshll.u32 %s223, 4
          %s225 = int_to_ptr.hbm [resolvable:$true] %s224
          %s226 = sshll.u32 %s219, 4
          %s227 = int_to_ptr.vmem [resolvable:$true] %s226
          %232 = dma.hbm_to_vmem [thread:$0]  %s225, 256, %s227, %s216, 640, 128, 8
        $region32: #{tpu_custom_call.1} parent=23 // pred_fallthru
          _
        // Predicated region
        $region33: #{tpu_custom_call.1} parent=23 // pred_check
          %p233 = pneg %p134
        $region34: #{tpu_custom_call.1} parent=23 // pred_check_branch
          %235 = sbr.rel (%p233) target = $region36
        $region35: #{tpu_custom_call.1} parent=23 // pred_region
          %p236 = scmp.lt.s32.totalorder %s20, 4
          %s237 = scalar_select %p236, %s20, 4
          %s238 = smul.addr %s237, 8
          %s239 = scalar_lea.vmem %s4, %s238
        $region36: #{tpu_custom_call.1} parent=23 // pred_fallthru
          _
      $region24: #{tpu_custom_call.1} parent=5 // pred_fallthru
        _
      %p240 = scmp.le.s32.totalorder 1, %s20
      %p241 = scmp.lt.s32.totalorder %s20, 6
      %p242 = pnand %p240, %p241
      %p243 = pneg %p242
      // Predicated region
      $region37: #{tpu_custom_call.1} parent=5 // pred_check
        _
      $region38: #{tpu_custom_call.1} parent=5 // pred_check_branch
        %245 = sbr.rel (%p242) target = $region40
      $region39: #{tpu_custom_call.1} parent=5 // pred_region
        %s246 = ssub.s32 %s20, 1
        %s247 = sand.u32 %s75, 1
        %s248 = scalar_lea.sflag [#allocation3], %s247
        %s249 = sand.u32 %s75, 1
        %s250 = smul.addr %s249, 32
        %s251 = scalar_lea.vmem [#allocation2], %s250
        // Predicated region
        $region41: #{tpu_custom_call.1} parent=39 // pred_check
          %p252 = pneg %p88
        $region42: #{tpu_custom_call.1} parent=39 // pred_check_branch
          %254 = sbr.rel (%p252) target = $region44
        $region43: #{tpu_custom_call.1} parent=39 // pred_region
          %256 = dma.done %s248, 512
        $region44: #{tpu_custom_call.1} parent=39 // pred_fallthru
          _
        %s257 = sand.u32 %s101, 1
        %s258 = scalar_lea.sflag [#allocation6], %s257
        %s259 = sand.u32 %s101, 1
        %s260 = smul.addr %s259, 16
        %s261 = scalar_lea.vmem [#allocation5], %s260
        // Predicated region
        $region45: #{tpu_custom_call.1} parent=39 // pred_check
          %p262 = pneg %p114
        $region46: #{tpu_custom_call.1} parent=39 // pred_check_branch
          %264 = sbr.rel (%p262) target = $region48
        $region47: #{tpu_custom_call.1} parent=39 // pred_region
          %266 = dma.done %s258, 256
        $region48: #{tpu_custom_call.1} parent=39 // pred_fallthru
          _
        %p267 = pneg %p41
        %p268 = pneg %p38
        %p269 = pneg %p62
        %p270 = pneg %p59
        %s271 = sand.u32 %s75, 1
        %s272 = scalar_lea.sflag [#allocation3], %s271
        %s273 = sand.u32 %s75, 1
        %s274 = smul.addr %s273, 32
        %s275 = scalar_lea.vmem [#allocation2], %s274
        %p276 = pneg %p88
        %p277 = pneg %p85
        %s278 = sand.u32 %s101, 1
        %s279 = scalar_lea.sflag [#allocation6], %s278
        %s280 = sand.u32 %s101, 1
        %s281 = smul.addr %s280, 16
        %s282 = scalar_lea.vmem [#allocation5], %s281
        %p283 = pneg %p114
        %p284 = pneg %p111
        %p285 = scmp.lt.s32.totalorder %s25, 4
        %s286 = scalar_select %p285, %s25, 4
        %s287 = smul.addr %s286, 8
        %s288 = scalar_lea.vmem %s4, %s287
        %p289 = pneg %p140
        %p290 = pneg %p137
        %p291 = pneg %p166
        %p292 = pneg %p163
        %s293 = sand.u32 %s153, 1
        %s294 = scalar_lea.sflag [#allocation4], %s293
        %s295 = sand.u32 %s153, 1
        %s296 = smul.addr %s295, 8
        %s297 = scalar_lea.vmem [#allocation7], %s296
        %p298 = scmp.lt.s32.totalorder %s25, 4
        %s299 = scalar_select %p298, %s25, 4
        %s300 = smul.addr %s299, 8
        %s301 = scalar_lea.vmem %s4, %s300
        %v302 = vld [vmem:[%s251] sm:$0xff]
        %v303 = vld [vmem:[%s251 + $0x8] sm:$0xff]
        %v304 = vld [vmem:[%s251 + $0x10] sm:$0xff]
        %v305 = vld [vmem:[%s251 + $0x18] sm:$0xff]
        %v306 = vld [vmem:[%s0] sm:$0xff]
        %v307 = vld [vmem:[%s0 + $0x8] sm:$0xff]
        %v308 = vld [vmem:[%s0 + $0x10] sm:$0xff]
        %v309 = vld [vmem:[%s0 + $0x18] sm:$0xff]
        %v310 = vld [vmem:[%s261] sm:$0xff]
        %v311 = vld [vmem:[%s261 + $0x8] sm:$0xff]
        %vm312 = vcmask 130048
        %v314 = vsel %vm312, %v306, 0
        %v317 = vsel %vm312, %v307, 0
        %v320 = vsel %vm312, %v308, 0
        %v323 = vsel %vm312, %v309, 0
        %325 = vmatpush.msra.mxu0 0.0
        %326 = vmatpush.msra.mxu0 0.0
        %327 = vmatpush.msra.mxu0 0.0
        %328 = vmatpush.msra.mxu0 0.0
        %329 = vmatpush.msra.mxu0 0.0
        %330 = vmatpush.msra.mxu0 0.0
        %331 = vmatpush.msra.mxu0 0.0
        %332 = vmatpush.msra.mxu0 0.0
        %333 = vmatpush.msra.mxu0 0.0
        %334 = vmatpush.msra.mxu0 0.0
        %335 = vmatpush.msra.mxu0 0.0
        %336 = vmatpush.msra.mxu0 0.0
        %337 = vmatpush.msra.mxu0 0.0
        %338 = vmatpush.msra.mxu0 0.0
        %339 = vmatpush.msra.mxu0 %v311
        %340 = vmatpush.msra.mxu0 %v310
        %341 = vmatmul.f32.gmra.mxu0 %v314
        %v342 = vpop.f32.mrf.mxu0
        %v343 = vadd.f32 0.0, %v342
        %344 = vmatmul.f32.gmra.mxu0 %v317
        %v345 = vpop.f32.mrf.mxu0
        %v346 = vadd.f32 0.0, %v345
        %347 = vmatmul.f32.gmra.mxu0 %v320
        %v348 = vpop.f32.mrf.mxu0
        %v349 = vadd.f32 0.0, %v348
        %350 = vmatmul.f32.gmra.mxu0 %v323
        %v351 = vpop.f32.mrf.mxu0
        %v352 = vadd.f32 0.0, %v351
        %353 = vdwg.mxu0
        %v354 = vsub.f32 %v343, %v302
        %v355 = vsub.f32 %v346, %v303
        %v356 = vsub.f32 %v349, %v304
        %v357 = vsub.f32 %v352, %v305
        %v358 = vmul.f32 %v354, %v354
        %v359 = vmul.f32 %v355, %v355
        %v360 = vmul.f32 %v356, %v356
        %v361 = vmul.f32 %v357, %v357
        %v362 = vadd.f32 %v358, %v359
        %v363 = vadd.f32 %v362, %v360
        %v364 = vadd.f32 %v363, %v361
        %v365 = vrot.slane %v364, 4
        %v366 = vadd.f32 %v364, %v365
        %v367 = vrot.slane %v366, 2
        %v368 = vadd.f32 %v366, %v367
        %v369 = vrot.slane %v368, 1
        %v370 = vadd.f32 %v368, %v369
        %v371 = vld [vmem:[%s1] sm:$0xff]
        %v372 = vld [vmem:[%s1 + $0x8] sm:$0xff]
        %v373 = vld [vmem:[%s301] sm:$0xff]
        %vm374 = vcmask 64512
        %v376 = vsel %vm374, %v371, 0
        %v379 = vsel %vm374, %v372, 0
        %381 = vmatpush.msra.mxu0 0.0
        %382 = vmatpush.msra.mxu0 0.0
        %383 = vmatpush.msra.mxu0 0.0
        %384 = vmatpush.msra.mxu0 0.0
        %385 = vmatpush.msra.mxu0 0.0
        %386 = vmatpush.msra.mxu0 0.0
        %387 = vmatpush.msra.mxu0 0.0
        %388 = vmatpush.msra.mxu0 0.0
        %389 = vmatpush.msra.mxu0 0.0
        %390 = vmatpush.msra.mxu0 0.0
        %391 = vmatpush.msra.mxu0 0.0
        %392 = vmatpush.msra.mxu0 0.0
        %393 = vmatpush.msra.mxu0 0.0
        %394 = vmatpush.msra.mxu0 0.0
        %395 = vmatpush.msra.mxu0 0.0
        %396 = vmatpush.msra.mxu0 %v373
        %397 = vmatmul.f32.gmra.mxu0 %v376
        %v398 = vpop.f32.mrf.mxu0
        %v399 = vadd.f32 0.0, %v398
        %400 = vmatmul.f32.gmra.mxu0 %v379
        %v401 = vpop.f32.mrf.mxu0
        %v402 = vadd.f32 0.0, %v401
        %403 = vdwg.mxu0
        %v404 = vsub.f32 %v399, %v310
        %v405 = vsub.f32 %v402, %v311
        %v406 = vmul.f32 %v404, %v404
        %v407 = vmul.f32 %v405, %v405
        %v408 = vadd.f32 %v406, %v407
        %v409 = vrot.slane %v408, 4
        %v410 = vadd.f32 %v408, %v409
        %v411 = vrot.slane %v410, 2
        %v412 = vadd.f32 %v410, %v411
        %v413 = vrot.slane %v412, 1
        %v414 = vadd.f32 %v412, %v413
        %415 = vst [vmem:[%s297] sm:$0xff] 0.0
        %416 = vst [vmem:[%s297] sm:$0x1] %v370
        %417 = vst [vmem:[%s297 + $0x1] sm:$0x1] %v414
        %s418 = sand.u32 %s153, 1
        %s419 = scalar_lea.sflag [#allocation4], %s418
        %s420 = sand.u32 %s153, 1
        %s421 = smul.addr %s420, 8
        %s422 = scalar_lea.vmem [#allocation7], %s421
        // Predicated region
        $region49: #{tpu_custom_call.1} parent=39 // pred_check
          %p423 = pneg %p163
        $region50: #{tpu_custom_call.1} parent=39 // pred_check_branch
          %425 = sbr.rel (%p423) target = $region52
        $region51: #{tpu_custom_call.1} parent=39 // pred_region
          %427 = vsyncadd %s419, 0
          %s428 = smul.addr %s25, 8
          %s429 = scalar_lea.hbm %s5, %s428
          %s431 = sshll.u32 %s422, 4
          %s432 = int_to_ptr.vmem [resolvable:$true] %s431
          %s433 = sshll.u32 %s429, 4
          %s434 = int_to_ptr.hbm [resolvable:$true] %s433
          %436 = dma.vmem_to_hbm [thread:$0]  %s432, 128, %s434, %s419
        $region52: #{tpu_custom_call.1} parent=39 // pred_fallthru
          _
      $region40: #{tpu_custom_call.1} parent=5 // pred_fallthru
        _
      %p437 = scmp.le.s32.totalorder 2, %s20
      // Predicated region
      $region53: #{tpu_custom_call.1} parent=5 // pred_check
        %p438 = pneg %p437
      $region54: #{tpu_custom_call.1} parent=5 // pred_check_branch
        %440 = sbr.rel (%p438) target = $region56
      $region55: #{tpu_custom_call.1} parent=5 // pred_region
        %s441 = ssub.s32 %s20, 2
        // Predicated region
        $region57: #{tpu_custom_call.1} parent=55 // pred_check
          %p442 = pneg %p169
        $region58: #{tpu_custom_call.1} parent=55 // pred_check_branch
          %444 = sbr.rel (%p442) target = $region60
        $region59: #{tpu_custom_call.1} parent=55 // pred_region
          %s445 = sand.u32 %s154, 1
          %s446 = scalar_lea.sflag [#allocation4], %s445
          %s447 = sand.u32 %s154, 1
          %s448 = smul.addr %s447, 8
          %s449 = scalar_lea.vmem [#allocation7], %s448
          %451 = dma.done %s446, 128
        $region60: #{tpu_custom_call.1} parent=55 // pred_fallthru
          _
      $region56: #{tpu_custom_call.1} parent=5 // pred_fallthru
        _
    $region6: #{tpu_custom_call.1} parent=1 // loop_footer
      %s24 = sadd.s32 1, %s20
    $region7: #{tpu_custom_call.1} parent=1 // loop_footer_branch
      %19 = sbr.rel target = $region3
    $region8: #{tpu_custom_call.1} parent=1 // loop_exit
      _
    %452 = vsyncpa [#allocation3], 1
    %s453 = scalar_lea.sflag [#allocation3], 1
    %454 = vsyncpa %s453, 1
    %455 = vsyncpa [#allocation6], 1
    %s456 = scalar_lea.sflag [#allocation6], 1
    %457 = vsyncpa %s456, 1
    %458 = vsyncpa [#allocation4], 1
    %s459 = scalar_lea.sflag [#allocation4], 1
    %460 = vsyncpa %s459, 1

</llo_original>
